<compile_context>
chip_gen: v7x
topology: tpu7x:2x2x1
jax: 0.10.0
libtpu: 0.0.40
codegen_flags: <defaults>
</compile_context>

<pallas_src>
import jax
import jax.numpy as jnp
from jax.experimental import pallas as pl
from jax.experimental.pallas import tpu as pltpu


def _gsc_kernel(params_ref, x_ref, z_ref, w_ref, o_ref):
    # params_ref (SMEM): [bias, cost_weight, epsilon, 1/||w||^2, 1/||w||]
    bias = params_ref[0]
    cost_weight = params_ref[1]
    eps = params_ref[2]
    inv_norm_sq = params_ref[3]
    inv_norm = params_ref[4]

    x = x_ref[...]            # (TB, D)
    z = z_ref[...]            # (TB, 1)
    w = w_ref[...]            # (1, D)

    # strategic model score: f(x) = x·w + b          -> (TB, 1)
    score = jnp.sum(x * w, axis=-1, keepdims=True) + bias

    # x' - x = step * w, with step a per-row scalar.
    step = z * (eps * inv_norm) - score * inv_norm_sq   # (TB, 1)
    x_cand = x + step * w                               # (TB, D)

    # L2 cost of moving: ||step * w|| = |step| * ||w|| = |z*eps - score/||w|||
    cost = jnp.abs(z * eps - score * inv_norm)          # (TB, 1)

    # move only if currently on the wrong side of z AND the move is worthwhile
    move = jnp.logical_and(z * score <= 0.0, 2.0 - cost_weight * cost > 0.0)
    o_ref[...] = jnp.where(move, x_cand, x)


def _round_up(a, m):
    return (a + m - 1) // m * m


def gsc_find_x_prime(x, z, w, bias, cost_weight=1.0, eps=0.01, tile_b=None):
    """x: (B, D) f32, z: (B,) or (B,1) in {-1,+1}, w: (D,) f32, bias: scalar.

    Assumes ||w|| > 0 (same implicit assumption as the reference formula).
    """
    B, D = x.shape

    # Lane-dense feature dimension: pad D up to a multiple of 128.
    D_pad = max(128, _round_up(D, 128))

    # Row tile sized so 2x double-buffered (x + out) f32 buffers stay well
    # under the scoped VMEM limit on every generation (v7x included).
    if tile_b is None:
        budget_bytes = 8 * 1024 * 1024                  # ~8 MiB of tile buffers
        rows = budget_bytes // (4 * D_pad * 4)          # 4 buffers * D_pad * 4B
        rows = max(8, (rows // 8) * 8)
        tile_b = int(min(1024, rows))
    tile_b = max(8, min(_round_up(tile_b, 8), _round_up(B, 8)))

    B_pad = _round_up(B, tile_b)

    x = x.astype(jnp.float32)
    if B_pad != B or D_pad != D:
        x_p = jnp.pad(x, ((0, B_pad - B), (0, D_pad - D)))
    else:
        x_p = x

    z_flat = z.reshape(B).astype(jnp.float32)
    if B_pad != B:
        # pad target labels with +1 (padded rows have score = bias; harmless,
        # they are sliced off below anyway).
        z_flat = jnp.pad(z_flat, (0, B_pad - B), constant_values=1.0)
    z_p = z_flat.reshape(B_pad, 1)

    w_flat = w.reshape(D).astype(jnp.float32)
    if D_pad != D:
        w_flat = jnp.pad(w_flat, (0, D_pad - D))
    w_p = w_flat.reshape(1, D_pad)

    # w is grid-invariant: precompute its norm terms once, pass via SMEM.
    norm_sq = jnp.sum(w_p * w_p)
    inv_norm_sq = 1.0 / norm_sq
    inv_norm = 1.0 / jnp.sqrt(norm_sq)
    params = jnp.stack([
        jnp.asarray(bias, jnp.float32),
        jnp.asarray(cost_weight, jnp.float32),
        jnp.asarray(eps, jnp.float32),
        inv_norm_sq.astype(jnp.float32),
        inv_norm.astype(jnp.float32),
    ])

    grid = (B_pad // tile_b,)
    out = pl.pallas_call(
        _gsc_kernel,
        out_shape=jax.ShapeDtypeStruct((B_pad, D_pad), jnp.float32),
        grid_spec=pltpu.PrefetchScalarGridSpec(
            num_scalar_prefetch=0,
            grid=grid,
            in_specs=[
                pl.BlockSpec(memory_space=pltpu.MemorySpace.SMEM),    # params
                pl.BlockSpec((tile_b, D_pad), lambda i: (i, 0)),       # x
                pl.BlockSpec((tile_b, 1), lambda i: (i, 0)),           # z
                pl.BlockSpec((1, D_pad), lambda i: (0, 0)),            # w
            ],
            out_specs=pl.BlockSpec((tile_b, D_pad), lambda i: (i, 0)),
        ),
        input_output_aliases={1: 0},   # non-moving rows return x unchanged
        compiler_params=pltpu.CompilerParams(
            dimension_semantics=("parallel",),
            vmem_limit_bytes=32 * 1024 * 1024,
        ),
    )(params, x_p, z_p, w_p)

    if B_pad != B or D_pad != D:
        out = out[:B, :D]
    return out


def gsc_reference(x, z, w, bias, cost_weight=1.0, eps=0.01):
    z2 = z.reshape(-1, 1).astype(jnp.float32)
    w2 = w.reshape(1, -1).astype(jnp.float32)
    score = x @ w.reshape(-1, 1) + bias
    norm_sq = jnp.sum(w * w)
    proj = x - score / norm_sq * w2
    x_cand = proj + z2 * eps * w2 / jnp.sqrt(norm_sq)
    cost = jnp.sqrt(jnp.sum((x_cand - x) ** 2, axis=-1, keepdims=True))
    move = jnp.logical_and(z2 * score <= 0.0, 2.0 - cost_weight * cost > 0.0)
    return jnp.where(move, x_cand, x)


if __name__ == "__main__":
    key = jax.random.PRNGKey(0)
    kx, kz, kw = jax.random.split(key, 3)

    # Small shapes (B not a multiple of 8, D not a multiple of 128) to exercise
    # the padding paths; the kernel itself tiles up to ~1024 rows for real B.
    B, D = 20, 32
    x = jax.random.normal(kx, (B, D), dtype=jnp.float32)
    z = jnp.where(jax.random.bernoulli(kz, 0.5, (B,)), 1.0, -1.0).astype(jnp.float32)
    # deterministic "strategic model" parameters (nn.Linear(D, 1) equivalent)
    w = jax.random.normal(kw, (D,), dtype=jnp.float32) * 0.1
    bias = 0.25
    cost_weight = 1.0
    eps = 0.01

    x_prime = gsc_find_x_prime(x, z, w, bias, cost_weight, eps)
    x_prime = jax.block_until_ready(x_prime)

    ref = gsc_reference(x, z, w, bias, cost_weight, eps)
    assert x_prime.shape == (B, D)
    assert jnp.allclose(x_prime, ref, atol=1e-5, rtol=1e-5)

    print("KERNEL_OK")
</pallas_src>

<mosaic_0001>
module attributes {stable_mosaic.version = 11 : i64} {
  func.func @_gsc_kernel(%arg0: i32, %arg1: memref<5xf32, #tpu.memory_space<smem>>, %arg2: memref<24x128xf32, #tpu.memory_space<vmem>>, %arg3: memref<24x1xf32, #tpu.memory_space<vmem>>, %arg4: memref<1x128xf32, #tpu.memory_space<vmem>>, %arg5: memref<24x128xf32, #tpu.memory_space<vmem>>) attributes {dimension_semantics = [#tpu.dimension_semantics<parallel>], iteration_bounds = array<i64: 1>, scalar_prefetch = 0 : i64, scratch_operands = 0 : i64, tpu.core_type = #tpu.core_type<tc>, window_params = [{transform_indices = @transform_0, window_bounds = array<i64: 5>}, {transform_indices = @transform_1, window_bounds = array<i64: 24, 128>}, {transform_indices = @transform_2, window_bounds = array<i64: 24, 1>}, {pipeline_mode = #tpu.pipeline_mode<synchronous>, transform_indices = @transform_3, window_bounds = array<i64: 1, 128>}, {transform_indices = @transform_4, window_bounds = array<i64: 24, 128>}]} {
    %c0 = arith.constant 0 : index
    %0 = memref.load %arg1[%c0] : memref<5xf32, #tpu.memory_space<smem>>
    %c1 = arith.constant 1 : index
    %1 = memref.load %arg1[%c1] : memref<5xf32, #tpu.memory_space<smem>>
    %c2 = arith.constant 2 : index
    %2 = memref.load %arg1[%c2] : memref<5xf32, #tpu.memory_space<smem>>
    %c3 = arith.constant 3 : index
    %3 = memref.load %arg1[%c3] : memref<5xf32, #tpu.memory_space<smem>>
    %c4 = arith.constant 4 : index
    %4 = memref.load %arg1[%c4] : memref<5xf32, #tpu.memory_space<smem>>
    %c0_0 = arith.constant 0 : index
    %c0_1 = arith.constant 0 : index
    %5 = vector.load %arg2[%c0_0, %c0_1] : memref<24x128xf32, #tpu.memory_space<vmem>>, vector<24x128xf32>
    %c0_2 = arith.constant 0 : index
    %c0_3 = arith.constant 0 : index
    %6 = vector.load %arg3[%c0_2, %c0_3] : memref<24x1xf32, #tpu.memory_space<vmem>>, vector<24x1xf32>
    %c0_4 = arith.constant 0 : index
    %c0_5 = arith.constant 0 : index
    %7 = vector.load %arg4[%c0_4, %c0_5] : memref<1x128xf32, #tpu.memory_space<vmem>>, vector<1x128xf32>
    %8 = vector.broadcast %7 : vector<1x128xf32> to vector<24x128xf32>
    %9 = arith.mulf %5, %8 : vector<24x128xf32>
    %cst = arith.constant dense<0.000000e+00> : vector<24xf32>
    %10 = vector.multi_reduction <add>, %9, %cst [1] : vector<24x128xf32> to vector<24xf32>
    %11 = vector.shape_cast %10 : vector<24xf32> to vector<24x1xf32>
    %12 = vector.broadcast %0 : f32 to vector<24x1xf32>
    %13 = arith.addf %11, %12 : vector<24x1xf32>
    %14 = arith.mulf %2, %4 : f32
    %15 = vector.broadcast %14 : f32 to vector<24x1xf32>
    %16 = arith.mulf %6, %15 : vector<24x1xf32>
    %17 = vector.broadcast %3 : f32 to vector<24x1xf32>
    %18 = arith.mulf %13, %17 : vector<24x1xf32>
    %19 = arith.subf %16, %18 : vector<24x1xf32>
    %20 = vector.broadcast %19 : vector<24x1xf32> to vector<24x128xf32>
    %21 = vector.broadcast %7 : vector<1x128xf32> to vector<24x128xf32>
    %22 = arith.mulf %20, %21 : vector<24x128xf32>
    %23 = arith.addf %5, %22 : vector<24x128xf32>
    %24 = vector.broadcast %2 : f32 to vector<24x1xf32>
    %25 = arith.mulf %6, %24 : vector<24x1xf32>
    %26 = vector.broadcast %4 : f32 to vector<24x1xf32>
    %27 = arith.mulf %13, %26 : vector<24x1xf32>
    %28 = arith.subf %25, %27 : vector<24x1xf32>
    %29 = math.absf %28 : vector<24x1xf32>
    %30 = arith.mulf %6, %13 : vector<24x1xf32>
    %cst_6 = arith.constant 0.000000e+00 : f32
    %31 = vector.broadcast %cst_6 : f32 to vector<24x1xf32>
    %32 = arith.cmpf ole, %30, %31 : vector<24x1xf32>
    %33 = vector.broadcast %1 : f32 to vector<24x1xf32>
    %34 = arith.mulf %33, %29 : vector<24x1xf32>
    %cst_7 = arith.constant 2.000000e+00 : f32
    %35 = vector.broadcast %cst_7 : f32 to vector<24x1xf32>
    %36 = arith.subf %35, %34 : vector<24x1xf32>
    %cst_8 = arith.constant 0.000000e+00 : f32
    %37 = vector.broadcast %cst_8 : f32 to vector<24x1xf32>
    %38 = arith.cmpf ogt, %36, %37 : vector<24x1xf32>
    %39 = arith.andi %32, %38 : vector<24x1xi1>
    %40 = vector.shape_cast %39 : vector<24x1xi1> to vector<24x1xi1>
    %41 = vector.broadcast %40 : vector<24x1xi1> to vector<24x128xi1>
    %42 = arith.select %41, %23, %5 : vector<24x128xi1>, vector<24x128xf32>
    %c0_9 = arith.constant 0 : index
    %c0_10 = arith.constant 0 : index
    %43 = vector.load %arg5[%c0_9, %c0_10] : memref<24x128xf32, #tpu.memory_space<vmem>>, vector<24x128xf32>
    tpu.vector_store %arg5[%c0_9, %c0_10], %42 {strides = array<i32>} : memref<24x128xf32, #tpu.memory_space<vmem>>, vector<24x128xf32>,
    return
  }
  func.func @transform_0(%arg0: i32) -> i32 {
    %c0_i32 = arith.constant 0 : i32
    %c0_i32_0 = arith.constant 0 : i32
    return %c0_i32 : i32
  }
  func.func @transform_1(%arg0: i32) -> (i32, i32) {
    %c0_i32 = arith.constant 0 : i32
    %c0_i32_0 = arith.constant 0 : i32
    return %arg0, %c0_i32 : i32, i32
  }
  func.func @transform_2(%arg0: i32) -> (i32, i32) {
    %c0_i32 = arith.constant 0 : i32
    %c0_i32_0 = arith.constant 0 : i32
    return %arg0, %c0_i32 : i32, i32
  }
  func.func @transform_3(%arg0: i32) -> (i32, i32) {
    %c0_i32 = arith.constant 0 : i32
    %c0_i32_0 = arith.constant 0 : i32
    %c0_i32_1 = arith.constant 0 : i32
    return %c0_i32, %c0_i32_0 : i32, i32
  }
  func.func @transform_4(%arg0: i32) -> (i32, i32) {
    %c0_i32 = arith.constant 0 : i32
    %c0_i32_0 = arith.constant 0 : i32
    return %arg0, %c0_i32 : i32, i32
  }
}

</mosaic_0001>

<llo_original>
// kernel: tpu_custom_call.1
$region0: #{tpu_custom_call.1}
  #allocation0 [shape = 'u32[]', space=smem, size = 0x4, offset = 0x4, fixed_abs, tag = 'smem constant byte address 0x4 - core index']
  #allocation1 [shape = 'u32[144,128]{1,0:T(1,128)}', space=vmem, size = 0x12000, scoped, tag = 'internal scratch']
  %s0 = inlined_call_operand.vmem [shape: f32[5], index: 0, kind: input, shape index: {}]
  %s1 = inlined_call_operand.hbm [shape: f32[24,128], index: 1, kind: input, shape index: {}, may-alias: {1,4}]
  %s2 = inlined_call_operand.vmem [shape: f32[24,1], index: 2, kind: input, shape index: {}]
  %s3 = inlined_call_operand.vmem [shape: f32[1,128], index: 3, kind: input, shape index: {}]
  %s4 = inlined_call_operand.hbm [shape: f32[24,128], index: 4, kind: output, shape index: {}, may-alias: {1,4}]
  %s5 = sld [smem:[#allocation0]]
  $region34: #{tpu_custom_call.1} parent=0
    _
  %s7 = ssub.s32 1, %s5
  %s8 = scalar_select 0, %s7, %s5
  $region1: #{tpu_custom_call.1} parent=0
    #allocation2 [shape = 'u8[512]{0}', space=smem, size = 0x200, scoped, tag = 'input window, operand 0, single buffered']
    #allocation3 [shape = 's32[1]{0}', space=sflag, size = 0x4, scoped, tag = 'scoped memory for tpu_custom_call.1']
    #allocation4 [shape = 's32[1]{0}', space=sflag, size = 0x4, scoped, tag = 'scoped memory for tpu_custom_call.1']
    #allocation5 [shape = 's32[1]{0}', space=sflag, size = 0x4, scoped, tag = 'scoped memory for tpu_custom_call.1']
    #allocation6 [shape = 'u8[12288]{0}', space=vmem, size = 0x3000, scoped, tag = 'input window, operand 1, single buffered']
    #allocation7 [shape = 'u8[12288]{0}', space=vmem, size = 0x3000, scoped, tag = 'output window, operand 0, single buffered']
    %9 = vsyncpa [#allocation5], 0
    %10 = vsyncpa [#allocation3], 0
    %11 = vsyncpa [#allocation4], 0
    // Predicated region
    $region2: #{tpu_custom_call.1} parent=1 // pred_check
      _
    $region3: #{tpu_custom_call.1} parent=1 // pred_check_branch
      %13 = sbr.rel (0) target = $region5
    $region4: #{tpu_custom_call.1} parent=1 // pred_region
      %s15 = ssub.s32 16, 16
      %16 = vsyncadd [#allocation5], %s15
      %s18 = sshll.u32 %s0, 4
      %s19 = int_to_ptr.vmem [resolvable:$true] %s18
      %21 = dma.vmem_to_smem %s19, 16, [#allocation2], [#allocation5]
    $region5: #{tpu_custom_call.1} parent=1 // pred_fallthru
      _
    // Predicated region
    $region6: #{tpu_custom_call.1} parent=1 // pred_check
      _
    $region7: #{tpu_custom_call.1} parent=1 // pred_check_branch
      %23 = sbr.rel (0) target = $region9
    $region8: #{tpu_custom_call.1} parent=1 // pred_region
      %s25 = ssub.s32 384, 384
      %26 = vsyncadd [#allocation3], %s25
      %s27 = sshll.u32 [#allocation6], 4
      %s28 = int_to_ptr.vmem [resolvable:$true] %s27
      %33 = dma.hbm_to_vmem [thread:$0]  %s1, 384, %s28, [#allocation3], 128, 128, 8
    $region9: #{tpu_custom_call.1} parent=1 // pred_fallthru
      _
    // Predicated region
    $region10: #{tpu_custom_call.1} parent=1 // pred_check
      _
    $region11: #{tpu_custom_call.1} parent=1 // pred_check_branch
      %35 = sbr.rel (0) target = $region13
    $region12: #{tpu_custom_call.1} parent=1 // pred_region
      _
    $region13: #{tpu_custom_call.1} parent=1 // pred_fallthru
      _
    // Predicated region
    $region14: #{tpu_custom_call.1} parent=1 // pred_check
      _
    $region15: #{tpu_custom_call.1} parent=1 // pred_check_branch
      %37 = sbr.rel (0) target = $region17
    $region16: #{tpu_custom_call.1} parent=1 // pred_region
      _
    $region17: #{tpu_custom_call.1} parent=1 // pred_fallthru
      _
    // Predicated region
    $region18: #{tpu_custom_call.1} parent=1 // pred_check
      _
    $region19: #{tpu_custom_call.1} parent=1 // pred_check_branch
      %39 = sbr.rel (0) target = $region21
    $region20: #{tpu_custom_call.1} parent=1 // pred_region
      %40 = dma.done [#allocation5], 16
    $region21: #{tpu_custom_call.1} parent=1 // pred_fallthru
      _
    // Predicated region
    $region22: #{tpu_custom_call.1} parent=1 // pred_check
      _
    $region23: #{tpu_custom_call.1} parent=1 // pred_check_branch
      %42 = sbr.rel (0) target = $region25
    $region24: #{tpu_custom_call.1} parent=1 // pred_region
      %43 = dma.done [#allocation3], 384
    $region25: #{tpu_custom_call.1} parent=1 // pred_fallthru
      _
    %44 = sfence
    %s45 = sld [smem:[#allocation2]]
    %s46 = sld [smem:[#allocation2 + $0x1]]
    %s47 = sld [smem:[#allocation2 + $0x2]]
    %s48 = sld [smem:[#allocation2 + $0x3]]
    %s49 = sld [smem:[#allocation2 + $0x4]]
    %v50 = vld [vmem:[#allocation6] sm:$0xff]
    %v51 = vld [vmem:[#allocation6 + $0x8] sm:$0xff]
    %v52 = vld [vmem:[#allocation6 + $0x10] sm:$0xff]
    %v53 = vld [vmem:[%s2] sm:$0xff]
    %v54 = vld [vmem:[%s2 + $0x8] sm:$0xff]
    %v55 = vld [vmem:[%s2 + $0x10] sm:$0xff]
    %v56 = vld [vmem:[%s3] sm:$0x1]
    %v58 = vlaneseq
    %v59 = vshrl.u32 %v58, 7
    %v60 = vsub.s32 0, %v59
    %v61 = vrot.slane %v56, %v60
    %v63 = vmul.f32 %v50, %v61
    %v64 = vmul.f32 %v51, %v61
    %v65 = vmul.f32 %v52, %v61
    %66 = vadd.xlane.f32.xlu0 %v63
    %v67 = vpop.xlane.xlu0 %66
    %68 = vadd.xlane.f32.xlu0 %v64
    %v69 = vpop.xlane.xlu0 %68
    %70 = vadd.xlane.f32.xlu0 %v65
    %v71 = vpop.xlane.xlu0 %70
    %v72 = vstv %s45
    %v73 = vadd.f32 %v67, %v72
    %v74 = vadd.f32 %v69, %v72
    %v75 = vadd.f32 %v71, %v72
    %s76 = smul.f32 %s47, %s49
    %v77 = vstv %s76
    %v78 = vmul.f32 %v53, %v77
    %v79 = vmul.f32 %v54, %v77
    %v80 = vmul.f32 %v55, %v77
    %v81 = vstv %s48
    %v82 = vmul.f32 %v73, %v81
    %v83 = vmul.f32 %v74, %v81
    %v84 = vmul.f32 %v75, %v81
    %v85 = vsub.f32 %v78, %v82
    %v86 = vsub.f32 %v79, %v83
    %v87 = vsub.f32 %v80, %v84
    %89 = vset.pattern.permute.xlu0 0
    %90 = vperm.xlu0 %89, %v85
    %v91 = vpop.permute.xlu0 %90
    %94 = vset.pattern.permute.xlu0 0
    %95 = vperm.xlu0 %94, %v86
    %v96 = vpop.permute.xlu0 %95
    %99 = vset.pattern.permute.xlu0 0
    %100 = vperm.xlu0 %99, %v87
    %v101 = vpop.permute.xlu0 %100
    %v103 = vmul.f32 %v91, %v61
    %v104 = vmul.f32 %v96, %v61
    %v105 = vmul.f32 %v101, %v61
    %v106 = vadd.f32 %v50, %v103
    %v107 = vadd.f32 %v51, %v104
    %v108 = vadd.f32 %v52, %v105
    %v109 = vstv %s47
    %v110 = vmul.f32 %v53, %v109
    %v111 = vmul.f32 %v54, %v109
    %v112 = vmul.f32 %v55, %v109
    %v113 = vstv %s49
    %v114 = vmul.f32 %v73, %v113
    %v115 = vmul.f32 %v74, %v113
    %v116 = vmul.f32 %v75, %v113
    %v117 = vsub.f32 %v110, %v114
    %v118 = vsub.f32 %v111, %v115
    %v119 = vsub.f32 %v112, %v116
    %v120 = vand.u32 2147483647, %v117
    %v121 = vand.u32 2147483647, %v118
    %v122 = vand.u32 2147483647, %v119
    %v123 = vmul.f32 %v53, %v73
    %v124 = vmul.f32 %v54, %v74
    %v125 = vmul.f32 %v55, %v75
    %vm126 = vcmp.le.f32.partialorder %v123, 0.0
    %vm127 = vcmp.le.f32.partialorder %v124, 0.0
    %vm128 = vcmp.le.f32.partialorder %v125, 0.0
    %v129 = vstv %s46
    %v130 = vmul.f32 %v129, %v120
    %v131 = vmul.f32 %v129, %v121
    %v132 = vmul.f32 %v129, %v122
    %v133 = vsub.f32 2.0, %v130
    %v134 = vsub.f32 2.0, %v131
    %v135 = vsub.f32 2.0, %v132
    %vm136 = vcmp.gt.f32.partialorder %v133, 0.0
    %vm137 = vcmp.gt.f32.partialorder %v134, 0.0
    %vm138 = vcmp.gt.f32.partialorder %v135, 0.0
    %vm139 = vmand %vm126, %vm136
    %vm140 = vmand %vm127, %vm137
    %vm141 = vmand %vm128, %vm138
    %v142 = vsel %vm139, 1, 0
    %v143 = vsel %vm140, 1, 0
    %v144 = vsel %vm141, 1, 0
    %145 = vset.pattern.permute.xlu0 0
    %146 = vperm.xlu0 %145, %v142
    %v147 = vpop.permute.xlu0 %146
    %148 = vset.pattern.permute.xlu0 0
    %149 = vperm.xlu0 %148, %v143
    %v150 = vpop.permute.xlu0 %149
    %151 = vset.pattern.permute.xlu0 0
    %152 = vperm.xlu0 %151, %v144
    %v153 = vpop.permute.xlu0 %152
    %vm154 = vcmp.eq.s32.totalorder %v147, 1
    %vm155 = vcmp.eq.s32.totalorder %v150, 1
    %vm156 = vcmp.eq.s32.totalorder %v153, 1
    %v157 = vsel %vm154, %v106, %v50
    %v158 = vsel %vm155, %v107, %v51
    %v159 = vsel %vm156, %v108, %v52
    %160 = vst [vmem:[#allocation7] sm:$0xff] %v157
    %161 = vst [vmem:[#allocation7 + $0x8] sm:$0xff] %v158
    %162 = vst [vmem:[#allocation7 + $0x10] sm:$0xff] %v159
    // Predicated region
    $region26: #{tpu_custom_call.1} parent=1 // pred_check
      _
    $region27: #{tpu_custom_call.1} parent=1 // pred_check_branch
      %164 = sbr.rel (0) target = $region29
    $region28: #{tpu_custom_call.1} parent=1 // pred_region
      %s166 = ssub.s32 384, 384
      %167 = vsyncadd [#allocation4], %s166
      %s168 = sshll.u32 [#allocation7], 4
      %s169 = int_to_ptr.vmem [resolvable:$true] %s168
      %174 = dma.vmem_to_hbm [thread:$0]  %s169, 384, %s4, [#allocation4], 128, 128, 8
    $region29: #{tpu_custom_call.1} parent=1 // pred_fallthru
      _
    // Predicated region
    $region30: #{tpu_custom_call.1} parent=1 // pred_check
      _
    $region31: #{tpu_custom_call.1} parent=1 // pred_check_branch
      %176 = sbr.rel (0) target = $region33
    $region32: #{tpu_custom_call.1} parent=1 // pred_region
      %177 = dma.done [#allocation4], 384
    $region33: #{tpu_custom_call.1} parent=1 // pred_fallthru
      _
    %178 = vsyncpa [#allocation3], 1
    %179 = vsyncpa [#allocation4], 1
    %180 = vsyncpa [#allocation5], 1

</llo_original>
